<compile_context>
chip_gen: v7x
topology: tpu7x:2x2x1
jax: 0.10.0
libtpu: 0.0.40
codegen_flags: <defaults>
</compile_context>

<pallas_src>
import functools

import numpy as np

import jax
import jax.numpy as jnp
from jax import lax
from jax.experimental import pallas as pl
from jax.experimental.pallas import tpu as pltpu


def _round_up(n, m):
    return ((n + m - 1) // m) * m


def aff_kernel(x_ref, y_ref, lw1_ref, lb1_ref, lw2_ref, pp_ref, qq_ref, lc_ref,
               o_ref, *, slab, n_slabs, neg_mask, compute_dtype):
    """Processes one (TB, 128) batch tile as `n_slabs` sub-slabs of `slab` rows."""
    f32 = jnp.float32
    C = pp_ref.shape[0]

    # Loop-invariant local-branch parameters (a handful of vregs, loaded once).
    lw1 = lw1_ref[...]          # (F, C)  folded conv1 (+BN1) weight
    lb1 = lb1_ref[...]          # (1, C)  folded conv1 (+BN1) bias
    lw2 = lw2_ref[...]          # (1, C)  folded conv2 (+BN2) weight
    lc = lc_ref[0]              # scalar  merged bias (local conv2+BN2 and global conv4+BN4)

    def slab_body(s, carry):
        r0 = pl.multiple_of(s * slab, slab)
        xs = x_ref[pl.ds(r0, slab), :].astype(f32)
        ys = y_ref[pl.ds(r0, slab), :].astype(f32)
        z = xs + ys                                                   # (slab, F)

        # ---- local attention: full-F conv == small MXU matmul + XLU reduce ----
        h = jnp.dot(z, lw1, preferred_element_type=f32)               # (slab, C)
        h = jnp.maximum(h + lb1, 0.0)
        xl = jnp.sum(h * lw2, axis=-1, keepdims=True) + lc            # (slab, 1)

        # ---- global attention: per-channel 1x1 convs on the VPU ----
        # |gw| is folded into (pp, qq); the sign becomes a static max/min choice.
        zc = z.astype(compute_dtype)
        acc = None
        for c in range(C):                     # static unroll, C == 32
            p = pp_ref[c].astype(compute_dtype)
            q = qq_ref[c].astype(compute_dtype)
            v = p * zc + q
            v = jnp.minimum(v, 0) if neg_mask[c] else jnp.maximum(v, 0)
            acc = v if acc is None else acc + v

        # ---- sigmoid gate (EUP exp + approx reciprocal) + blend ----
        logits = xl + acc.astype(f32)                                 # (slab, F)
        wei = pl.reciprocal(1.0 + jnp.exp(-logits), approx=True)
        o_ref[pl.ds(r0, slab), :] = (ys + (xs - ys) * wei).astype(o_ref.dtype)
        return carry

    lax.fori_loop(0, n_slabs, slab_body, 0)


def fold_aff_params(p, eps=1e-5):
    """Fold conv + inference-mode BatchNorm params into the kernel layout.

    Call ONCE outside jit / outside the hot path (it inspects concrete weight
    signs).  Returns (params, neg_mask): device arrays + a static per-channel
    tuple of bools (sign of the folded conv4 weight).
    """
    f32 = jnp.float32
    # local branch: Conv2d(1, C, (1, F)) + BN(C)
    a1 = p["bn1_g"] / jnp.sqrt(p["bn1_v"] + eps)
    d1 = p["bn1_b"] - p["bn1_m"] * a1
    lw1 = (p["conv1_w"] * a1[:, None]).T                   # (F, C)
    lb1 = (p["conv1_b"] * a1 + d1)[None, :]                # (1, C)
    # local branch: Conv2d(C, 1, 1) + BN(1)
    a2 = p["bn2_g"] / jnp.sqrt(p["bn2_v"] + eps)
    d2 = p["bn2_b"] - p["bn2_m"] * a2
    lw2 = (p["conv2_w"] * a2)[None, :]                     # (1, C)
    lb2 = p["conv2_b"] * a2 + d2                           # (1,)
    # global branch: Conv2d(1, C, 1) + BN(C)
    a3 = p["bn3_g"] / jnp.sqrt(p["bn3_v"] + eps)
    d3 = p["bn3_b"] - p["bn3_m"] * a3
    gp = p["conv3_w"] * a3                                 # (C,)
    gq = p["conv3_b"] * a3 + d3                            # (C,)
    # global branch: Conv2d(C, 1, 1) + BN(1)
    a4 = p["bn4_g"] / jnp.sqrt(p["bn4_v"] + eps)
    d4 = p["bn4_b"] - p["bn4_m"] * a4
    gw = p["conv4_w"] * a4                                 # (C,)
    gb = p["conv4_b"] * a4 + d4                            # (1,)

    # Sign-fold gw into the per-channel affine (see kernel docstring).
    pp = gw * gp
    qq = gw * gq
    neg_mask = tuple(bool(v) for v in (np.asarray(jax.device_get(gw)) < 0.0))

    params = {
        "lw1": lw1.astype(f32), "lb1": lb1.astype(f32), "lw2": lw2.astype(f32),
        "pp": pp.astype(f32), "qq": qq.astype(f32),
        "lc": jnp.reshape(lb2 + gb, (1,)).astype(f32),
    }
    return params, neg_mask


def pick_global_branch_dtype():
    """bf16 global-branch compute on chips with a bf16 VPU (v6e / v7x); f32 otherwise."""
    try:
        kind = jax.devices()[0].device_kind.lower()
    except Exception:
        return jnp.float32
    return jnp.bfloat16 if ("v6" in kind or "v7" in kind) else jnp.float32


def aff_forward(x, y, params, neg_mask, *, block_rows=1024,
                compute_dtype=jnp.float32, slab_rows=64):
    """AFF forward.  x, y: (B, 128) -> (B, 128)."""
    B, F = x.shape
    if F != 128:
        raise ValueError("AFF requires feature_size == 128 "
                         "(Conv2d kernel_size=(1,128) / AdaptiveAvgPool2d((1,128))).")
    lw1, lb1, lw2 = params["lw1"], params["lb1"], params["lw2"]
    pp, qq, lc = params["pp"], params["qq"], params["lc"]
    C = lw1.shape[1]
    if len(neg_mask) != C:
        raise ValueError("neg_mask length must equal inter_channels")

    # ---- batch tile: lane-dense (tb, 128), no host-side padding ----
    if B <= 8:
        tb = B                                  # single full-extent block
    else:
        # >= 2 tiles whenever possible (v7x megacore), multiples of 8 sublanes.
        tb = min(block_rows, _round_up(B, 8), _round_up(pl.cdiv(B, 2), 8))
    slab = min(slab_rows, tb)                   # inner sub-slab bounds vreg live ranges
    if tb % slab != 0:
        tb = _round_up(tb, slab)
    n_slabs = tb // slab
    grid = (pl.cdiv(B, tb),)                    # ragged tail: OOB reads harmless, writes dropped

    kernel = functools.partial(
        aff_kernel, slab=slab, n_slabs=n_slabs,
        neg_mask=tuple(bool(m) for m in neg_mask), compute_dtype=compute_dtype)

    itemsize = x.dtype.itemsize
    cost = pl.CostEstimate(
        flops=int(B) * (2 * F * C + 5 * C + F * (3 * C + 12)),
        transcendentals=2 * int(B) * F,
        bytes_accessed=3 * int(B) * F * itemsize + (F * C + 4 * C + 3) * 4,
    )

    return pl.pallas_call(
        kernel,
        out_shape=jax.ShapeDtypeStruct((B, F), x.dtype),
        grid_spec=pltpu.PrefetchScalarGridSpec(
            num_scalar_prefetch=0,
            grid=grid,
            in_specs=[
                pl.BlockSpec((tb, F), lambda i: (i, 0)),            # x batch tile
                pl.BlockSpec((tb, F), lambda i: (i, 0)),            # y batch tile
                pl.BlockSpec((F, C), lambda i: (0, 0)),             # local conv1+BN weight
                pl.BlockSpec((1, C), lambda i: (0, 0)),             # local conv1+BN bias
                pl.BlockSpec((1, C), lambda i: (0, 0)),             # local conv2+BN weight
                pl.BlockSpec(memory_space=pltpu.MemorySpace.SMEM),  # pp (C,) scalars
                pl.BlockSpec(memory_space=pltpu.MemorySpace.SMEM),  # qq (C,) scalars
                pl.BlockSpec(memory_space=pltpu.MemorySpace.SMEM),  # lc (1,) scalar
            ],
            out_specs=pl.BlockSpec((tb, F), lambda i: (i, 0)),
        ),
        compiler_params=pltpu.CompilerParams(
            dimension_semantics=("parallel",),                      # batch tiles independent
        ),
        cost_estimate=cost,
    )(x, y, lw1, lb1, lw2, pp, qq, lc)


def aff_reference(x, y, p, eps=1e-5):
    """Pure-JAX reference following the PyTorch forward (inference-mode BN)."""
    def bn(t, g, b, m, v):
        return (t - m) / jnp.sqrt(v + eps) * g + b

    z = x + y                                                  # (B, F)
    # local_att
    t = z @ p["conv1_w"].T + p["conv1_b"]                      # (B, C)
    t = bn(t, p["bn1_g"], p["bn1_b"], p["bn1_m"], p["bn1_v"])
    t = jnp.maximum(t, 0.0)
    xl = t @ p["conv2_w"] + p["conv2_b"]                       # (B,)
    xl = bn(xl, p["bn2_g"], p["bn2_b"], p["bn2_m"], p["bn2_v"])[:, None]
    # global_att (AdaptiveAvgPool2d((1,128)) is the identity for F == 128)
    u = z[:, None, :] * p["conv3_w"][None, :, None] + p["conv3_b"][None, :, None]
    u = bn(u, p["bn3_g"][None, :, None], p["bn3_b"][None, :, None],
           p["bn3_m"][None, :, None], p["bn3_v"][None, :, None])
    u = jnp.maximum(u, 0.0)                                    # (B, C, F)
    xg = jnp.einsum("bcf,c->bf", u, p["conv4_w"]) + p["conv4_b"]
    xg = bn(xg, p["bn4_g"], p["bn4_b"], p["bn4_m"], p["bn4_v"])
    wei = jax.nn.sigmoid(xl + xg)
    return x * wei + y * (1.0 - wei)


if __name__ == "__main__":
    key = jax.random.PRNGKey(0)
    keys = jax.random.split(key, 26)

    channels, r = 128, 4
    C = channels // r          # inter_channels = 32
    F = channels               # feature_size must be 128 (kernel_size=(1,128))

    def _norm(k, shape):
        return 0.1 * jax.random.normal(k, shape, dtype=jnp.float32)

    def _unif(k, shape):
        return jax.random.uniform(k, shape, dtype=jnp.float32, minval=0.5, maxval=1.5)

    raw = {
        # local_att: Conv2d(1,C,(1,128)) -> BN(C) -> ReLU -> Conv2d(C,1,1) -> BN(1)
        "conv1_w": _norm(keys[0], (C, F)), "conv1_b": _norm(keys[1], (C,)),
        "bn1_g": _unif(keys[2], (C,)), "bn1_b": _norm(keys[3], (C,)),
        "bn1_m": _norm(keys[4], (C,)), "bn1_v": _unif(keys[5], (C,)),
        "conv2_w": _norm(keys[6], (C,)), "conv2_b": _norm(keys[7], (1,)),
        "bn2_g": _unif(keys[8], (1,)), "bn2_b": _norm(keys[9], (1,)),
        "bn2_m": _norm(keys[10], (1,)), "bn2_v": _unif(keys[11], (1,)),
        # global_att: AvgPool((1,128)) -> Conv2d(1,C,1) -> BN(C) -> ReLU -> Conv2d(C,1,1) -> BN(1)
        "conv3_w": _norm(keys[12], (C,)), "conv3_b": _norm(keys[13], (C,)),
        "bn3_g": _unif(keys[14], (C,)), "bn3_b": _norm(keys[15], (C,)),
        "bn3_m": _norm(keys[16], (C,)), "bn3_v": _unif(keys[17], (C,)),
        "conv4_w": _norm(keys[18], (C,)), "conv4_b": _norm(keys[19], (1,)),
        "bn4_g": _unif(keys[20], (1,)), "bn4_b": _norm(keys[21], (1,)),
        "bn4_m": _norm(keys[22], (1,)), "bn4_v": _unif(keys[23], (1,)),
    }

    params, neg_mask = fold_aff_params(raw)      # fold ONCE outside the hot path
    compute_dtype = pick_global_branch_dtype()   # bf16 on v6e/v7x, f32 otherwise

    fwd = jax.jit(lambda xx, yy, prm: aff_forward(
        xx, yy, prm, neg_mask, compute_dtype=compute_dtype))

    # Tolerance budget: the EUP approximate-reciprocal sigmoid (all chips) and
    # the bf16 global branch (v6e/v7x only) perturb `wei` at the ~1e-3 level;
    # a genuine logic bug would miss by >= 1e-1.
    tol = 4e-2 if compute_dtype == jnp.bfloat16 else 3e-2

    # Two shapes: tiny batch (single full-extent tile) and a multi-tile batch
    # that exercises the inner slab fori_loop and the ragged last tile.
    for B in (4, 200):
        kx, ky = jax.random.split(jax.random.fold_in(keys[24], B))
        x = jax.random.normal(kx, (B, F), dtype=jnp.float32)
        y = jax.random.normal(ky, (B, F), dtype=jnp.float32)

        out = jax.block_until_ready(fwd(x, y, params))
        ref = aff_reference(x, y, raw)

        assert out.shape == (B, F)
        err = float(jnp.max(jnp.abs(out - ref)))
        assert err < tol, (B, err)

    print("KERNEL_OK")
</pallas_src>

<mosaic_0001>
module attributes {stable_mosaic.version = 11 : i64} {
  func.func @aff_kernel(%arg0: i32, %arg1: memref<4x128xf32, #tpu.memory_space<vmem>>, %arg2: memref<4x128xf32, #tpu.memory_space<vmem>>, %arg3: memref<128x32xf32, #tpu.memory_space<vmem>>, %arg4: memref<1x32xf32, #tpu.memory_space<vmem>>, %arg5: memref<1x32xf32, #tpu.memory_space<vmem>>, %arg6: memref<32xf32, #tpu.memory_space<smem>>, %arg7: memref<32xf32, #tpu.memory_space<smem>>, %arg8: memref<1xf32, #tpu.memory_space<smem>>, %arg9: memref<4x128xf32, #tpu.memory_space<vmem>>) attributes {dimension_semantics = [#tpu.dimension_semantics<parallel>], iteration_bounds = array<i64: 1>, scalar_prefetch = 0 : i64, scratch_operands = 0 : i64, tpu.core_type = #tpu.core_type<tc>, window_params = [{transform_indices = @transform_0, window_bounds = array<i64: 4, 128>}, {transform_indices = @transform_1, window_bounds = array<i64: 4, 128>}, {pipeline_mode = #tpu.pipeline_mode<synchronous>, transform_indices = @transform_2, window_bounds = array<i64: 128, 32>}, {pipeline_mode = #tpu.pipeline_mode<synchronous>, transform_indices = @transform_3, window_bounds = array<i64: 1, 32>}, {pipeline_mode = #tpu.pipeline_mode<synchronous>, transform_indices = @transform_4, window_bounds = array<i64: 1, 32>}, {transform_indices = @transform_5, window_bounds = array<i64: 32>}, {transform_indices = @transform_6, window_bounds = array<i64: 32>}, {transform_indices = @transform_7, window_bounds = array<i64: 1>}, {transform_indices = @transform_8, window_bounds = array<i64: 4, 128>}]} {
    %c0 = arith.constant 0 : index
    %c0_0 = arith.constant 0 : index
    %0 = vector.load %arg3[%c0, %c0_0] : memref<128x32xf32, #tpu.memory_space<vmem>>, vector<128x32xf32>
    %c0_1 = arith.constant 0 : index
    %c0_2 = arith.constant 0 : index
    %1 = vector.load %arg4[%c0_1, %c0_2] : memref<1x32xf32, #tpu.memory_space<vmem>>, vector<1x32xf32>
    %c0_3 = arith.constant 0 : index
    %c0_4 = arith.constant 0 : index
    %2 = vector.load %arg5[%c0_3, %c0_4] : memref<1x32xf32, #tpu.memory_space<vmem>>, vector<1x32xf32>
    %c0_5 = arith.constant 0 : index
    %3 = memref.load %arg8[%c0_5] : memref<1xf32, #tpu.memory_space<smem>>
    %c0_i32 = arith.constant 0 : i32
    %c4_i32 = arith.constant 4 : i32
    %4 = arith.muli %c0_i32, %c4_i32 : i32
    %5 = tpu.assume_multiple %4, 4 : i32
    %6 = arith.index_cast %5 : i32 to index
    %c0_6 = arith.constant 0 : index
    %7 = vector.load %arg1[%6, %c0_6] : memref<4x128xf32, #tpu.memory_space<vmem>>, vector<4x128xf32>
    %8 = arith.index_cast %5 : i32 to index
    %c0_7 = arith.constant 0 : index
    %9 = vector.load %arg2[%8, %c0_7] : memref<4x128xf32, #tpu.memory_space<vmem>>, vector<4x128xf32>
    %10 = arith.addf %7, %9 : vector<4x128xf32>
    %cst = arith.constant dense<0.000000e+00> : vector<4x32xf32>
    %11 = tpu.matmul %10, %0, %cst {dimension_numbers = #tpu.dot_dimension_numbers<[1], [0], [0], [1], [0, 0, 1, 1], [], []>} : vector<4x128xf32>, vector<128x32xf32>, vector<4x32xf32> -> vector<4x32xf32>
    %12 = vector.broadcast %1 : vector<1x32xf32> to vector<4x32xf32>
    %13 = arith.addf %11, %12 : vector<4x32xf32>
    %cst_8 = arith.constant 0.000000e+00 : f32
    %14 = vector.broadcast %cst_8 : f32 to vector<4x32xf32>
    %15 = arith.maximumf %13, %14 : vector<4x32xf32>
    %16 = vector.broadcast %2 : vector<1x32xf32> to vector<4x32xf32>
    %17 = arith.mulf %15, %16 : vector<4x32xf32>
    %cst_9 = arith.constant dense<0.000000e+00> : vector<4xf32>
    %18 = vector.multi_reduction <add>, %17, %cst_9 [1] : vector<4x32xf32> to vector<4xf32>
    %19 = vector.shape_cast %18 : vector<4xf32> to vector<4x1xf32>
    %20 = vector.broadcast %3 : f32 to vector<4x1xf32>
    %21 = arith.addf %19, %20 : vector<4x1xf32>
    %c0_10 = arith.constant 0 : index
    %22 = memref.load %arg6[%c0_10] : memref<32xf32, #tpu.memory_space<smem>>
    %c0_11 = arith.constant 0 : index
    %23 = memref.load %arg7[%c0_11] : memref<32xf32, #tpu.memory_space<smem>>
    %24 = vector.broadcast %22 : f32 to vector<4x128xf32>
    %25 = arith.mulf %24, %10 : vector<4x128xf32>
    %26 = vector.broadcast %23 : f32 to vector<4x128xf32>
    %27 = arith.addf %25, %26 : vector<4x128xf32>
    %cst_12 = arith.constant 0.000000e+00 : f32
    %28 = vector.broadcast %cst_12 : f32 to vector<4x128xf32>
    %29 = arith.maximumf %27, %28 : vector<4x128xf32>
    %c1 = arith.constant 1 : index
    %30 = memref.load %arg6[%c1] : memref<32xf32, #tpu.memory_space<smem>>
    %c1_13 = arith.constant 1 : index
    %31 = memref.load %arg7[%c1_13] : memref<32xf32, #tpu.memory_space<smem>>
    %32 = vector.broadcast %30 : f32 to vector<4x128xf32>
    %33 = arith.mulf %32, %10 : vector<4x128xf32>
    %34 = vector.broadcast %31 : f32 to vector<4x128xf32>
    %35 = arith.addf %33, %34 : vector<4x128xf32>
    %cst_14 = arith.constant 0.000000e+00 : f32
    %36 = vector.broadcast %cst_14 : f32 to vector<4x128xf32>
    %37 = arith.minimumf %35, %36 : vector<4x128xf32>
    %38 = arith.addf %29, %37 : vector<4x128xf32>
    %c2 = arith.constant 2 : index
    %39 = memref.load %arg6[%c2] : memref<32xf32, #tpu.memory_space<smem>>
    %c2_15 = arith.constant 2 : index
    %40 = memref.load %arg7[%c2_15] : memref<32xf32, #tpu.memory_space<smem>>
    %41 = vector.broadcast %39 : f32 to vector<4x128xf32>
    %42 = arith.mulf %41, %10 : vector<4x128xf32>
    %43 = vector.broadcast %40 : f32 to vector<4x128xf32>
    %44 = arith.addf %42, %43 : vector<4x128xf32>
    %cst_16 = arith.constant 0.000000e+00 : f32
    %45 = vector.broadcast %cst_16 : f32 to vector<4x128xf32>
    %46 = arith.maximumf %44, %45 : vector<4x128xf32>
    %47 = arith.addf %38, %46 : vector<4x128xf32>
    %c3 = arith.constant 3 : index
    %48 = memref.load %arg6[%c3] : memref<32xf32, #tpu.memory_space<smem>>
    %c3_17 = arith.constant 3 : index
    %49 = memref.load %arg7[%c3_17] : memref<32xf32, #tpu.memory_space<smem>>
    %50 = vector.broadcast %48 : f32 to vector<4x128xf32>
    %51 = arith.mulf %50, %10 : vector<4x128xf32>
    %52 = vector.broadcast %49 : f32 to vector<4x128xf32>
    %53 = arith.addf %51, %52 : vector<4x128xf32>
    %cst_18 = arith.constant 0.000000e+00 : f32
    %54 = vector.broadcast %cst_18 : f32 to vector<4x128xf32>
    %55 = arith.minimumf %53, %54 : vector<4x128xf32>
    %56 = arith.addf %47, %55 : vector<4x128xf32>
    %c4 = arith.constant 4 : index
    %57 = memref.load %arg6[%c4] : memref<32xf32, #tpu.memory_space<smem>>
    %c4_19 = arith.constant 4 : index
    %58 = memref.load %arg7[%c4_19] : memref<32xf32, #tpu.memory_space<smem>>
    %59 = vector.broadcast %57 : f32 to vector<4x128xf32>
    %60 = arith.mulf %59, %10 : vector<4x128xf32>
    %61 = vector.broadcast %58 : f32 to vector<4x128xf32>
    %62 = arith.addf %60, %61 : vector<4x128xf32>
    %cst_20 = arith.constant 0.000000e+00 : f32
    %63 = vector.broadcast %cst_20 : f32 to vector<4x128xf32>
    %64 = arith.maximumf %62, %63 : vector<4x128xf32>
    %65 = arith.addf %56, %64 : vector<4x128xf32>
    %c5 = arith.constant 5 : index
    %66 = memref.load %arg6[%c5] : memref<32xf32, #tpu.memory_space<smem>>
    %c5_21 = arith.constant 5 : index
    %67 = memref.load %arg7[%c5_21] : memref<32xf32, #tpu.memory_space<smem>>
    %68 = vector.broadcast %66 : f32 to vector<4x128xf32>
    %69 = arith.mulf %68, %10 : vector<4x128xf32>
    %70 = vector.broadcast %67 : f32 to vector<4x128xf32>
    %71 = arith.addf %69, %70 : vector<4x128xf32>
    %cst_22 = arith.constant 0.000000e+00 : f32
    %72 = vector.broadcast %cst_22 : f32 to vector<4x128xf32>
    %73 = arith.maximumf %71, %72 : vector<4x128xf32>
    %74 = arith.addf %65, %73 : vector<4x128xf32>
    %c6 = arith.constant 6 : index
    %75 = memref.load %arg6[%c6] : memref<32xf32, #tpu.memory_space<smem>>
    %c6_23 = arith.constant 6 : index
    %76 = memref.load %arg7[%c6_23] : memref<32xf32, #tpu.memory_space<smem>>
    %77 = vector.broadcast %75 : f32 to vector<4x128xf32>
    %78 = arith.mulf %77, %10 : vector<4x128xf32>
    %79 = vector.broadcast %76 : f32 to vector<4x128xf32>
    %80 = arith.addf %78, %79 : vector<4x128xf32>
    %cst_24 = arith.constant 0.000000e+00 : f32
    %81 = vector.broadcast %cst_24 : f32 to vector<4x128xf32>
    %82 = arith.maximumf %80, %81 : vector<4x128xf32>
    %83 = arith.addf %74, %82 : vector<4x128xf32>
    %c7 = arith.constant 7 : index
    %84 = memref.load %arg6[%c7] : memref<32xf32, #tpu.memory_space<smem>>
    %c7_25 = arith.constant 7 : index
    %85 = memref.load %arg7[%c7_25] : memref<32xf32, #tpu.memory_space<smem>>
    %86 = vector.broadcast %84 : f32 to vector<4x128xf32>
    %87 = arith.mulf %86, %10 : vector<4x128xf32>
    %88 = vector.broadcast %85 : f32 to vector<4x128xf32>
    %89 = arith.addf %87, %88 : vector<4x128xf32>
    %cst_26 = arith.constant 0.000000e+00 : f32
    %90 = vector.broadcast %cst_26 : f32 to vector<4x128xf32>
    %91 = arith.minimumf %89, %90 : vector<4x128xf32>
    %92 = arith.addf %83, %91 : vector<4x128xf32>
    %c8 = arith.constant 8 : index
    %93 = memref.load %arg6[%c8] : memref<32xf32, #tpu.memory_space<smem>>
    %c8_27 = arith.constant 8 : index
    %94 = memref.load %arg7[%c8_27] : memref<32xf32, #tpu.memory_space<smem>>
    %95 = vector.broadcast %93 : f32 to vector<4x128xf32>
    %96 = arith.mulf %95, %10 : vector<4x128xf32>
    %97 = vector.broadcast %94 : f32 to vector<4x128xf32>
    %98 = arith.addf %96, %97 : vector<4x128xf32>
    %cst_28 = arith.constant 0.000000e+00 : f32
    %99 = vector.broadcast %cst_28 : f32 to vector<4x128xf32>
    %100 = arith.minimumf %98, %99 : vector<4x128xf32>
    %101 = arith.addf %92, %100 : vector<4x128xf32>
    %c9 = arith.constant 9 : index
    %102 = memref.load %arg6[%c9] : memref<32xf32, #tpu.memory_space<smem>>
    %c9_29 = arith.constant 9 : index
    %103 = memref.load %arg7[%c9_29] : memref<32xf32, #tpu.memory_space<smem>>
    %104 = vector.broadcast %102 : f32 to vector<4x128xf32>
    %105 = arith.mulf %104, %10 : vector<4x128xf32>
    %106 = vector.broadcast %103 : f32 to vector<4x128xf32>
    %107 = arith.addf %105, %106 : vector<4x128xf32>
    %cst_30 = arith.constant 0.000000e+00 : f32
    %108 = vector.broadcast %cst_30 : f32 to vector<4x128xf32>
    %109 = arith.minimumf %107, %108 : vector<4x128xf32>
    %110 = arith.addf %101, %109 : vector<4x128xf32>
    %c10 = arith.constant 10 : index
    %111 = memref.load %arg6[%c10] : memref<32xf32, #tpu.memory_space<smem>>
    %c10_31 = arith.constant 10 : index
    %112 = memref.load %arg7[%c10_31] : memref<32xf32, #tpu.memory_space<smem>>
    %113 = vector.broadcast %111 : f32 to vector<4x128xf32>
    %114 = arith.mulf %113, %10 : vector<4x128xf32>
    %115 = vector.broadcast %112 : f32 to vector<4x128xf32>
    %116 = arith.addf %114, %115 : vector<4x128xf32>
    %cst_32 = arith.constant 0.000000e+00 : f32
    %117 = vector.broadcast %cst_32 : f32 to vector<4x128xf32>
    %118 = arith.maximumf %116, %117 : vector<4x128xf32>
    %119 = arith.addf %110, %118 : vector<4x128xf32>
    %c11 = arith.constant 11 : index
    %120 = memref.load %arg6[%c11] : memref<32xf32, #tpu.memory_space<smem>>
    %c11_33 = arith.constant 11 : index
    %121 = memref.load %arg7[%c11_33] : memref<32xf32, #tpu.memory_space<smem>>
    %122 = vector.broadcast %120 : f32 to vector<4x128xf32>
    %123 = arith.mulf %122, %10 : vector<4x128xf32>
    %124 = vector.broadcast %121 : f32 to vector<4x128xf32>
    %125 = arith.addf %123, %124 : vector<4x128xf32>
    %cst_34 = arith.constant 0.000000e+00 : f32
    %126 = vector.broadcast %cst_34 : f32 to vector<4x128xf32>
    %127 = arith.maximumf %125, %126 : vector<4x128xf32>
    %128 = arith.addf %119, %127 : vector<4x128xf32>
    %c12 = arith.constant 12 : index
    %129 = memref.load %arg6[%c12] : memref<32xf32, #tpu.memory_space<smem>>
    %c12_35 = arith.constant 12 : index
    %130 = memref.load %arg7[%c12_35] : memref<32xf32, #tpu.memory_space<smem>>
    %131 = vector.broadcast %129 : f32 to vector<4x128xf32>
    %132 = arith.mulf %131, %10 : vector<4x128xf32>
    %133 = vector.broadcast %130 : f32 to vector<4x128xf32>
    %134 = arith.addf %132, %133 : vector<4x128xf32>
    %cst_36 = arith.constant 0.000000e+00 : f32
    %135 = vector.broadcast %cst_36 : f32 to vector<4x128xf32>
    %136 = arith.minimumf %134, %135 : vector<4x128xf32>
    %137 = arith.addf %128, %136 : vector<4x128xf32>
    %c13 = arith.constant 13 : index
    %138 = memref.load %arg6[%c13] : memref<32xf32, #tpu.memory_space<smem>>
    %c13_37 = arith.constant 13 : index
    %139 = memref.load %arg7[%c13_37] : memref<32xf32, #tpu.memory_space<smem>>
    %140 = vector.broadcast %138 : f32 to vector<4x128xf32>
    %141 = arith.mulf %140, %10 : vector<4x128xf32>
    %142 = vector.broadcast %139 : f32 to vector<4x128xf32>
    %143 = arith.addf %141, %142 : vector<4x128xf32>
    %cst_38 = arith.constant 0.000000e+00 : f32
    %144 = vector.broadcast %cst_38 : f32 to vector<4x128xf32>
    %145 = arith.maximumf %143, %144 : vector<4x128xf32>
    %146 = arith.addf %137, %145 : vector<4x128xf32>
    %c14 = arith.constant 14 : index
    %147 = memref.load %arg6[%c14] : memref<32xf32, #tpu.memory_space<smem>>
    %c14_39 = arith.constant 14 : index
    %148 = memref.load %arg7[%c14_39] : memref<32xf32, #tpu.memory_space<smem>>
    %149 = vector.broadcast %147 : f32 to vector<4x128xf32>
    %150 = arith.mulf %149, %10 : vector<4x128xf32>
    %151 = vector.broadcast %148 : f32 to vector<4x128xf32>
    %152 = arith.addf %150, %151 : vector<4x128xf32>
    %cst_40 = arith.constant 0.000000e+00 : f32
    %153 = vector.broadcast %cst_40 : f32 to vector<4x128xf32>
    %154 = arith.maximumf %152, %153 : vector<4x128xf32>
    %155 = arith.addf %146, %154 : vector<4x128xf32>
    %c15 = arith.constant 15 : index
    %156 = memref.load %arg6[%c15] : memref<32xf32, #tpu.memory_space<smem>>
    %c15_41 = arith.constant 15 : index
    %157 = memref.load %arg7[%c15_41] : memref<32xf32, #tpu.memory_space<smem>>
    %158 = vector.broadcast %156 : f32 to vector<4x128xf32>
    %159 = arith.mulf %158, %10 : vector<4x128xf32>
    %160 = vector.broadcast %157 : f32 to vector<4x128xf32>
    %161 = arith.addf %159, %160 : vector<4x128xf32>
    %cst_42 = arith.constant 0.000000e+00 : f32
    %162 = vector.broadcast %cst_42 : f32 to vector<4x128xf32>
    %163 = arith.maximumf %161, %162 : vector<4x128xf32>
    %164 = arith.addf %155, %163 : vector<4x128xf32>
    %c16 = arith.constant 16 : index
    %165 = memref.load %arg6[%c16] : memref<32xf32, #tpu.memory_space<smem>>
    %c16_43 = arith.constant 16 : index
    %166 = memref.load %arg7[%c16_43] : memref<32xf32, #tpu.memory_space<smem>>
    %167 = vector.broadcast %165 : f32 to vector<4x128xf32>
    %168 = arith.mulf %167, %10 : vector<4x128xf32>
    %169 = vector.broadcast %166 : f32 to vector<4x128xf32>
    %170 = arith.addf %168, %169 : vector<4x128xf32>
    %cst_44 = arith.constant 0.000000e+00 : f32
    %171 = vector.broadcast %cst_44 : f32 to vector<4x128xf32>
    %172 = arith.minimumf %170, %171 : vector<4x128xf32>
    %173 = arith.addf %164, %172 : vector<4x128xf32>
    %c17 = arith.constant 17 : index
    %174 = memref.load %arg6[%c17] : memref<32xf32, #tpu.memory_space<smem>>
    %c17_45 = arith.constant 17 : index
    %175 = memref.load %arg7[%c17_45] : memref<32xf32, #tpu.memory_space<smem>>
    %176 = vector.broadcast %174 : f32 to vector<4x128xf32>
    %177 = arith.mulf %176, %10 : vector<4x128xf32>
    %178 = vector.broadcast %175 : f32 to vector<4x128xf32>
    %179 = arith.addf %177, %178 : vector<4x128xf32>
    %cst_46 = arith.constant 0.000000e+00 : f32
    %180 = vector.broadcast %cst_46 : f32 to vector<4x128xf32>
    %181 = arith.minimumf %179, %180 : vector<4x128xf32>
    %182 = arith.addf %173, %181 : vector<4x128xf32>
    %c18 = arith.constant 18 : index
    %183 = memref.load %arg6[%c18] : memref<32xf32, #tpu.memory_space<smem>>
    %c18_47 = arith.constant 18 : index
    %184 = memref.load %arg7[%c18_47] : memref<32xf32, #tpu.memory_space<smem>>
    %185 = vector.broadcast %183 : f32 to vector<4x128xf32>
    %186 = arith.mulf %185, %10 : vector<4x128xf32>
    %187 = vector.broadcast %184 : f32 to vector<4x128xf32>
    %188 = arith.addf %186, %187 : vector<4x128xf32>
    %cst_48 = arith.constant 0.000000e+00 : f32
    %189 = vector.broadcast %cst_48 : f32 to vector<4x128xf32>
    %190 = arith.minimumf %188, %189 : vector<4x128xf32>
    %191 = arith.addf %182, %190 : vector<4x128xf32>
    %c19 = arith.constant 19 : index
    %192 = memref.load %arg6[%c19] : memref<32xf32, #tpu.memory_space<smem>>
    %c19_49 = arith.constant 19 : index
    %193 = memref.load %arg7[%c19_49] : memref<32xf32, #tpu.memory_space<smem>>
    %194 = vector.broadcast %192 : f32 to vector<4x128xf32>
    %195 = arith.mulf %194, %10 : vector<4x128xf32>
    %196 = vector.broadcast %193 : f32 to vector<4x128xf32>
    %197 = arith.addf %195, %196 : vector<4x128xf32>
    %cst_50 = arith.constant 0.000000e+00 : f32
    %198 = vector.broadcast %cst_50 : f32 to vector<4x128xf32>
    %199 = arith.maximumf %197, %198 : vector<4x128xf32>
    %200 = arith.addf %191, %199 : vector<4x128xf32>
    %c20 = arith.constant 20 : index
    %201 = memref.load %arg6[%c20] : memref<32xf32, #tpu.memory_space<smem>>
    %c20_51 = arith.constant 20 : index
    %202 = memref.load %arg7[%c20_51] : memref<32xf32, #tpu.memory_space<smem>>
    %203 = vector.broadcast %201 : f32 to vector<4x128xf32>
    %204 = arith.mulf %203, %10 : vector<4x128xf32>
    %205 = vector.broadcast %202 : f32 to vector<4x128xf32>
    %206 = arith.addf %204, %205 : vector<4x128xf32>
    %cst_52 = arith.constant 0.000000e+00 : f32
    %207 = vector.broadcast %cst_52 : f32 to vector<4x128xf32>
    %208 = arith.maximumf %206, %207 : vector<4x128xf32>
    %209 = arith.addf %200, %208 : vector<4x128xf32>
    %c21 = arith.constant 21 : index
    %210 = memref.load %arg6[%c21] : memref<32xf32, #tpu.memory_space<smem>>
    %c21_53 = arith.constant 21 : index
    %211 = memref.load %arg7[%c21_53] : memref<32xf32, #tpu.memory_space<smem>>
    %212 = vector.broadcast %210 : f32 to vector<4x128xf32>
    %213 = arith.mulf %212, %10 : vector<4x128xf32>
    %214 = vector.broadcast %211 : f32 to vector<4x128xf32>
    %215 = arith.addf %213, %214 : vector<4x128xf32>
    %cst_54 = arith.constant 0.000000e+00 : f32
    %216 = vector.broadcast %cst_54 : f32 to vector<4x128xf32>
    %217 = arith.minimumf %215, %216 : vector<4x128xf32>
    %218 = arith.addf %209, %217 : vector<4x128xf32>
    %c22 = arith.constant 22 : index
    %219 = memref.load %arg6[%c22] : memref<32xf32, #tpu.memory_space<smem>>
    %c22_55 = arith.constant 22 : index
    %220 = memref.load %arg7[%c22_55] : memref<32xf32, #tpu.memory_space<smem>>
    %221 = vector.broadcast %219 : f32 to vector<4x128xf32>
    %222 = arith.mulf %221, %10 : vector<4x128xf32>
    %223 = vector.broadcast %220 : f32 to vector<4x128xf32>
    %224 = arith.addf %222, %223 : vector<4x128xf32>
    %cst_56 = arith.constant 0.000000e+00 : f32
    %225 = vector.broadcast %cst_56 : f32 to vector<4x128xf32>
    %226 = arith.maximumf %224, %225 : vector<4x128xf32>
    %227 = arith.addf %218, %226 : vector<4x128xf32>
    %c23 = arith.constant 23 : index
    %228 = memref.load %arg6[%c23] : memref<32xf32, #tpu.memory_space<smem>>
    %c23_57 = arith.constant 23 : index
    %229 = memref.load %arg7[%c23_57] : memref<32xf32, #tpu.memory_space<smem>>
    %230 = vector.broadcast %228 : f32 to vector<4x128xf32>
    %231 = arith.mulf %230, %10 : vector<4x128xf32>
    %232 = vector.broadcast %229 : f32 to vector<4x128xf32>
    %233 = arith.addf %231, %232 : vector<4x128xf32>
    %cst_58 = arith.constant 0.000000e+00 : f32
    %234 = vector.broadcast %cst_58 : f32 to vector<4x128xf32>
    %235 = arith.minimumf %233, %234 : vector<4x128xf32>
    %236 = arith.addf %227, %235 : vector<4x128xf32>
    %c24 = arith.constant 24 : index
    %237 = memref.load %arg6[%c24] : memref<32xf32, #tpu.memory_space<smem>>
    %c24_59 = arith.constant 24 : index
    %238 = memref.load %arg7[%c24_59] : memref<32xf32, #tpu.memory_space<smem>>
    %239 = vector.broadcast %237 : f32 to vector<4x128xf32>
    %240 = arith.mulf %239, %10 : vector<4x128xf32>
    %241 = vector.broadcast %238 : f32 to vector<4x128xf32>
    %242 = arith.addf %240, %241 : vector<4x128xf32>
    %cst_60 = arith.constant 0.000000e+00 : f32
    %243 = vector.broadcast %cst_60 : f32 to vector<4x128xf32>
    %244 = arith.maximumf %242, %243 : vector<4x128xf32>
    %245 = arith.addf %236, %244 : vector<4x128xf32>
    %c25 = arith.constant 25 : index
    %246 = memref.load %arg6[%c25] : memref<32xf32, #tpu.memory_space<smem>>
    %c25_61 = arith.constant 25 : index
    %247 = memref.load %arg7[%c25_61] : memref<32xf32, #tpu.memory_space<smem>>
    %248 = vector.broadcast %246 : f32 to vector<4x128xf32>
    %249 = arith.mulf %248, %10 : vector<4x128xf32>
    %250 = vector.broadcast %247 : f32 to vector<4x128xf32>
    %251 = arith.addf %249, %250 : vector<4x128xf32>
    %cst_62 = arith.constant 0.000000e+00 : f32
    %252 = vector.broadcast %cst_62 : f32 to vector<4x128xf32>
    %253 = arith.maximumf %251, %252 : vector<4x128xf32>
    %254 = arith.addf %245, %253 : vector<4x128xf32>
    %c26 = arith.constant 26 : index
    %255 = memref.load %arg6[%c26] : memref<32xf32, #tpu.memory_space<smem>>
    %c26_63 = arith.constant 26 : index
    %256 = memref.load %arg7[%c26_63] : memref<32xf32, #tpu.memory_space<smem>>
    %257 = vector.broadcast %255 : f32 to vector<4x128xf32>
    %258 = arith.mulf %257, %10 : vector<4x128xf32>
    %259 = vector.broadcast %256 : f32 to vector<4x128xf32>
    %260 = arith.addf %258, %259 : vector<4x128xf32>
    %cst_64 = arith.constant 0.000000e+00 : f32
    %261 = vector.broadcast %cst_64 : f32 to vector<4x128xf32>
    %262 = arith.maximumf %260, %261 : vector<4x128xf32>
    %263 = arith.addf %254, %262 : vector<4x128xf32>
    %c27 = arith.constant 27 : index
    %264 = memref.load %arg6[%c27] : memref<32xf32, #tpu.memory_space<smem>>
    %c27_65 = arith.constant 27 : index
    %265 = memref.load %arg7[%c27_65] : memref<32xf32, #tpu.memory_space<smem>>
    %266 = vector.broadcast %264 : f32 to vector<4x128xf32>
    %267 = arith.mulf %266, %10 : vector<4x128xf32>
    %268 = vector.broadcast %265 : f32 to vector<4x128xf32>
    %269 = arith.addf %267, %268 : vector<4x128xf32>
    %cst_66 = arith.constant 0.000000e+00 : f32
    %270 = vector.broadcast %cst_66 : f32 to vector<4x128xf32>
    %271 = arith.maximumf %269, %270 : vector<4x128xf32>
    %272 = arith.addf %263, %271 : vector<4x128xf32>
    %c28 = arith.constant 28 : index
    %273 = memref.load %arg6[%c28] : memref<32xf32, #tpu.memory_space<smem>>
    %c28_67 = arith.constant 28 : index
    %274 = memref.load %arg7[%c28_67] : memref<32xf32, #tpu.memory_space<smem>>
    %275 = vector.broadcast %273 : f32 to vector<4x128xf32>
    %276 = arith.mulf %275, %10 : vector<4x128xf32>
    %277 = vector.broadcast %274 : f32 to vector<4x128xf32>
    %278 = arith.addf %276, %277 : vector<4x128xf32>
    %cst_68 = arith.constant 0.000000e+00 : f32
    %279 = vector.broadcast %cst_68 : f32 to vector<4x128xf32>
    %280 = arith.minimumf %278, %279 : vector<4x128xf32>
    %281 = arith.addf %272, %280 : vector<4x128xf32>
    %c29 = arith.constant 29 : index
    %282 = memref.load %arg6[%c29] : memref<32xf32, #tpu.memory_space<smem>>
    %c29_69 = arith.constant 29 : index
    %283 = memref.load %arg7[%c29_69] : memref<32xf32, #tpu.memory_space<smem>>
    %284 = vector.broadcast %282 : f32 to vector<4x128xf32>
    %285 = arith.mulf %284, %10 : vector<4x128xf32>
    %286 = vector.broadcast %283 : f32 to vector<4x128xf32>
    %287 = arith.addf %285, %286 : vector<4x128xf32>
    %cst_70 = arith.constant 0.000000e+00 : f32
    %288 = vector.broadcast %cst_70 : f32 to vector<4x128xf32>
    %289 = arith.maximumf %287, %288 : vector<4x128xf32>
    %290 = arith.addf %281, %289 : vector<4x128xf32>
    %c30 = arith.constant 30 : index
    %291 = memref.load %arg6[%c30] : memref<32xf32, #tpu.memory_space<smem>>
    %c30_71 = arith.constant 30 : index
    %292 = memref.load %arg7[%c30_71] : memref<32xf32, #tpu.memory_space<smem>>
    %293 = vector.broadcast %291 : f32 to vector<4x128xf32>
    %294 = arith.mulf %293, %10 : vector<4x128xf32>
    %295 = vector.broadcast %292 : f32 to vector<4x128xf32>
    %296 = arith.addf %294, %295 : vector<4x128xf32>
    %cst_72 = arith.constant 0.000000e+00 : f32
    %297 = vector.broadcast %cst_72 : f32 to vector<4x128xf32>
    %298 = arith.maximumf %296, %297 : vector<4x128xf32>
    %299 = arith.addf %290, %298 : vector<4x128xf32>
    %c31 = arith.constant 31 : index
    %300 = memref.load %arg6[%c31] : memref<32xf32, #tpu.memory_space<smem>>
    %c31_73 = arith.constant 31 : index
    %301 = memref.load %arg7[%c31_73] : memref<32xf32, #tpu.memory_space<smem>>
    %302 = vector.broadcast %300 : f32 to vector<4x128xf32>
    %303 = arith.mulf %302, %10 : vector<4x128xf32>
    %304 = vector.broadcast %301 : f32 to vector<4x128xf32>
    %305 = arith.addf %303, %304 : vector<4x128xf32>
    %cst_74 = arith.constant 0.000000e+00 : f32
    %306 = vector.broadcast %cst_74 : f32 to vector<4x128xf32>
    %307 = arith.minimumf %305, %306 : vector<4x128xf32>
    %308 = arith.addf %299, %307 : vector<4x128xf32>
    %309 = vector.broadcast %21 : vector<4x1xf32> to vector<4x128xf32>
    %310 = arith.addf %309, %308 : vector<4x128xf32>
    %cst_75 = arith.constant 0.000000e+00 : f32
    %311 = vector.broadcast %cst_75 : f32 to vector<4x128xf32>
    %312 = arith.subf %311, %310 : vector<4x128xf32>
    %313 = math.exp %312 : vector<4x128xf32>
    %cst_76 = arith.constant 1.000000e+00 : f32
    %314 = vector.broadcast %cst_76 : f32 to vector<4x128xf32>
    %315 = arith.addf %314, %313 : vector<4x128xf32>
    %316 = tpu.reciprocal %315 {approx = true} : vector<4x128xf32> -> vector<4x128xf32>
    %317 = arith.subf %7, %9 : vector<4x128xf32>
    %318 = arith.mulf %317, %316 : vector<4x128xf32>
    %319 = arith.addf %9, %318 : vector<4x128xf32>
    %320 = arith.index_cast %5 : i32 to index
    %c0_77 = arith.constant 0 : index
    %321 = vector.load %arg9[%320, %c0_77] : memref<4x128xf32, #tpu.memory_space<vmem>>, vector<4x128xf32>
    tpu.vector_store %arg9[%320, %c0_77], %319 {strides = array<i32>} : memref<4x128xf32, #tpu.memory_space<vmem>>, vector<4x128xf32>,
    %c1_i32 = arith.constant 1 : i32
    return
  }
  func.func @transform_0(%arg0: i32) -> (i32, i32) {
    %c0_i32 = arith.constant 0 : i32
    %c0_i32_0 = arith.constant 0 : i32
    return %arg0, %c0_i32 : i32, i32
  }
  func.func @transform_1(%arg0: i32) -> (i32, i32) {
    %c0_i32 = arith.constant 0 : i32
    %c0_i32_0 = arith.constant 0 : i32
    return %arg0, %c0_i32 : i32, i32
  }
  func.func @transform_2(%arg0: i32) -> (i32, i32) {
    %c0_i32 = arith.constant 0 : i32
    %c0_i32_0 = arith.constant 0 : i32
    %c0_i32_1 = arith.constant 0 : i32
    return %c0_i32, %c0_i32_0 : i32, i32
  }
  func.func @transform_3(%arg0: i32) -> (i32, i32) {
    %c0_i32 = arith.constant 0 : i32
    %c0_i32_0 = arith.constant 0 : i32
    %c0_i32_1 = arith.constant 0 : i32
    return %c0_i32, %c0_i32_0 : i32, i32
  }
  func.func @transform_4(%arg0: i32) -> (i32, i32) {
    %c0_i32 = arith.constant 0 : i32
    %c0_i32_0 = arith.constant 0 : i32
    %c0_i32_1 = arith.constant 0 : i32
    return %c0_i32, %c0_i32_0 : i32, i32
  }
  func.func @transform_5(%arg0: i32) -> i32 {
    %c0_i32 = arith.constant 0 : i32
    %c0_i32_0 = arith.constant 0 : i32
    return %c0_i32 : i32
  }
  func.func @transform_6(%arg0: i32) -> i32 {
    %c0_i32 = arith.constant 0 : i32
    %c0_i32_0 = arith.constant 0 : i32
    return %c0_i32 : i32
  }
  func.func @transform_7(%arg0: i32) -> i32 {
    %c0_i32 = arith.constant 0 : i32
    %c0_i32_0 = arith.constant 0 : i32
    return %c0_i32 : i32
  }
  func.func @transform_8(%arg0: i32) -> (i32, i32) {
    %c0_i32 = arith.constant 0 : i32
    %c0_i32_0 = arith.constant 0 : i32
    return %arg0, %c0_i32 : i32, i32
  }
}

</mosaic_0001>

<llo_original>
// kernel: _lambda_.1
$region0: #{_lambda_.1}
  #allocation0 [shape = 'u32[]', space=smem, size = 0x4, offset = 0x4, fixed_abs, tag = 'smem constant byte address 0x4 - core index']
  #allocation1 [shape = 'u32[144,128]{1,0:T(1,128)}', space=vmem, size = 0x12000, scoped, tag = 'internal scratch']
  #allocation2 [shape = 'f32[1]{0:T(128)S(6)}', space=smem, size = 0x200, scoped, tag = 'scoped memory for _lambda_.1']
  %s0 = inlined_call_operand.vmem [shape: f32[4,128], index: 0, kind: input, shape index: {}]
  %s1 = inlined_call_operand.vmem [shape: f32[4,128], index: 1, kind: input, shape index: {}]
  %s2 = inlined_call_operand.vmem [shape: f32[128,32], index: 2, kind: input, shape index: {}]
  %s3 = inlined_call_operand.vmem [shape: f32[1,32], index: 3, kind: input, shape index: {}]
  %s4 = inlined_call_operand.vmem [shape: f32[1,32], index: 4, kind: input, shape index: {}]
  %s5 = inlined_call_operand.vmem [shape: f32[32], index: 5, kind: input, shape index: {}]
  %s6 = inlined_call_operand.vmem [shape: f32[32], index: 6, kind: input, shape index: {}]
  %s7 = inlined_call_operand.<no memory space> [shape: f32[1], index: 7, kind: input, shape index: {}]
  %s8 = inlined_call_operand.hbm [shape: f32[4,128], index: 8, kind: output, shape index: {}]
  %s9 = sld [smem:[#allocation0]]
  $region50: #{_lambda_.1} parent=0
    _
  %s11 = ssub.s32 1, %s9
  %s12 = scalar_select 0, %s11, %s9
  %13 = sst [smem:[#allocation2]] %s7
  $region1: #{_lambda_.1} parent=0
    #allocation3 [shape = 'u8[512]{0}', space=smem, size = 0x200, scoped, tag = 'input window, operand 5, single buffered']
    #allocation4 [shape = 's32[1]{0}', space=sflag, size = 0x4, scoped, tag = 'scoped memory for _lambda_.1']
    #allocation5 [shape = 's32[1]{0}', space=sflag, size = 0x4, scoped, tag = 'scoped memory for _lambda_.1']
    #allocation6 [shape = 'u8[512]{0}', space=smem, size = 0x200, scoped, tag = 'input window, operand 6, single buffered']
    #allocation7 [shape = 's32[1]{0}', space=sflag, size = 0x4, scoped, tag = 'scoped memory for _lambda_.1']
    #allocation8 [shape = 'u8[2048]{0}', space=vmem, size = 0x800, scoped, tag = 'output window, operand 0, single buffered']
    %14 = vsyncpa [#allocation5], 0
    %15 = vsyncpa [#allocation7], 0
    %16 = vsyncpa [#allocation4], 0
    // Predicated region
    $region2: #{_lambda_.1} parent=1 // pred_check
      _
    $region3: #{_lambda_.1} parent=1 // pred_check_branch
      %18 = sbr.rel (0) target = $region5
    $region4: #{_lambda_.1} parent=1 // pred_region
      _
    $region5: #{_lambda_.1} parent=1 // pred_fallthru
      _
    // Predicated region
    $region6: #{_lambda_.1} parent=1 // pred_check
      _
    $region7: #{_lambda_.1} parent=1 // pred_check_branch
      %20 = sbr.rel (0) target = $region9
    $region8: #{_lambda_.1} parent=1 // pred_region
      _
    $region9: #{_lambda_.1} parent=1 // pred_fallthru
      _
    // Predicated region
    $region10: #{_lambda_.1} parent=1 // pred_check
      _
    $region11: #{_lambda_.1} parent=1 // pred_check_branch
      %22 = sbr.rel (0) target = $region13
    $region12: #{_lambda_.1} parent=1 // pred_region
      _
    $region13: #{_lambda_.1} parent=1 // pred_fallthru
      _
    // Predicated region
    $region14: #{_lambda_.1} parent=1 // pred_check
      _
    $region15: #{_lambda_.1} parent=1 // pred_check_branch
      %24 = sbr.rel (0) target = $region17
    $region16: #{_lambda_.1} parent=1 // pred_region
      _
    $region17: #{_lambda_.1} parent=1 // pred_fallthru
      _
    // Predicated region
    $region18: #{_lambda_.1} parent=1 // pred_check
      _
    $region19: #{_lambda_.1} parent=1 // pred_check_branch
      %26 = sbr.rel (0) target = $region21
    $region20: #{_lambda_.1} parent=1 // pred_region
      _
    $region21: #{_lambda_.1} parent=1 // pred_fallthru
      _
    // Predicated region
    $region22: #{_lambda_.1} parent=1 // pred_check
      _
    $region23: #{_lambda_.1} parent=1 // pred_check_branch
      %28 = sbr.rel (0) target = $region25
    $region24: #{_lambda_.1} parent=1 // pred_region
      %s30 = ssub.s32 16, 16
      %31 = vsyncadd [#allocation5], %s30
      %s33 = sshll.u32 %s5, 4
      %s34 = int_to_ptr.vmem [resolvable:$true] %s33
      %36 = dma.vmem_to_smem %s34, 16, [#allocation3], [#allocation5]
    $region25: #{_lambda_.1} parent=1 // pred_fallthru
      _
    // Predicated region
    $region26: #{_lambda_.1} parent=1 // pred_check
      _
    $region27: #{_lambda_.1} parent=1 // pred_check_branch
      %38 = sbr.rel (0) target = $region29
    $region28: #{_lambda_.1} parent=1 // pred_region
      %s40 = ssub.s32 16, 16
      %41 = vsyncadd [#allocation7], %s40
      %s43 = sshll.u32 %s6, 4
      %s44 = int_to_ptr.vmem [resolvable:$true] %s43
      %46 = dma.vmem_to_smem %s44, 16, [#allocation6], [#allocation7]
    $region29: #{_lambda_.1} parent=1 // pred_fallthru
      _
    // Predicated region
    $region30: #{_lambda_.1} parent=1 // pred_check
      _
    $region31: #{_lambda_.1} parent=1 // pred_check_branch
      %48 = sbr.rel (0) target = $region33
    $region32: #{_lambda_.1} parent=1 // pred_region
      _
    $region33: #{_lambda_.1} parent=1 // pred_fallthru
      _
    // Predicated region
    $region34: #{_lambda_.1} parent=1 // pred_check
      _
    $region35: #{_lambda_.1} parent=1 // pred_check_branch
      %50 = sbr.rel (0) target = $region37
    $region36: #{_lambda_.1} parent=1 // pred_region
      %51 = dma.done [#allocation5], 16
    $region37: #{_lambda_.1} parent=1 // pred_fallthru
      _
    // Predicated region
    $region38: #{_lambda_.1} parent=1 // pred_check
      _
    $region39: #{_lambda_.1} parent=1 // pred_check_branch
      %53 = sbr.rel (0) target = $region41
    $region40: #{_lambda_.1} parent=1 // pred_region
      %54 = dma.done [#allocation7], 16
    $region41: #{_lambda_.1} parent=1 // pred_fallthru
      _
    %55 = sfence
    %v56 = vld [vmem:[%s2] sm:$0xff]
    %v57 = vld [vmem:[%s2 + $0x8] sm:$0xff]
    %v58 = vld [vmem:[%s2 + $0x10] sm:$0xff]
    %v59 = vld [vmem:[%s2 + $0x18] sm:$0xff]
    %v60 = vld [vmem:[%s2 + $0x20] sm:$0xff]
    %v61 = vld [vmem:[%s2 + $0x28] sm:$0xff]
    %v62 = vld [vmem:[%s2 + $0x30] sm:$0xff]
    %v63 = vld [vmem:[%s2 + $0x38] sm:$0xff]
    %v64 = vld [vmem:[%s2 + $0x40] sm:$0xff]
    %v65 = vld [vmem:[%s2 + $0x48] sm:$0xff]
    %v66 = vld [vmem:[%s2 + $0x50] sm:$0xff]
    %v67 = vld [vmem:[%s2 + $0x58] sm:$0xff]
    %v68 = vld [vmem:[%s2 + $0x60] sm:$0xff]
    %v69 = vld [vmem:[%s2 + $0x68] sm:$0xff]
    %v70 = vld [vmem:[%s2 + $0x70] sm:$0xff]
    %v71 = vld [vmem:[%s2 + $0x78] sm:$0xff]
    %v72 = vld [vmem:[%s3] sm:$0x1]
    %v73 = vld [vmem:[%s4] sm:$0x1]
    %s74 = sld [smem:[#allocation2]]
    %v75 = vld [vmem:[%s0] sm:$0xf]
    %v76 = vld [vmem:[%s1] sm:$0xf]
    %v77 = vadd.f32 %v75, %v76
    %v79 = vlaneseq
    %v80 = vshrl.u32 %v79, 7
    %v81 = vsub.s32 0, %v80
    %v82 = vrot.slane %v72, %v81
    %84 = vmatprep.subr.mxu0 0.0
    %85 = vmatpush1.msra.mxu0 %v56
    %86 = vmatprep.subr.mxu0 0.0
    %87 = vmatpush1.msra.mxu0 %v57
    %88 = vmatprep.subr.mxu0 0.0
    %89 = vmatpush1.msra.mxu0 %v58
    %90 = vmatprep.subr.mxu0 0.0
    %91 = vmatpush1.msra.mxu0 %v59
    %92 = vmatprep.subr.mxu0 0.0
    %93 = vmatpush1.msra.mxu0 %v60
    %94 = vmatprep.subr.mxu0 0.0
    %95 = vmatpush1.msra.mxu0 %v61
    %96 = vmatprep.subr.mxu0 0.0
    %97 = vmatpush1.msra.mxu0 %v62
    %98 = vmatprep.subr.mxu0 0.0
    %99 = vmatpush1.msra.mxu0 %v63
    %100 = vmatprep.subr.mxu0 0.0
    %101 = vmatpush1.msra.mxu0 %v64
    %102 = vmatprep.subr.mxu0 0.0
    %103 = vmatpush1.msra.mxu0 %v65
    %104 = vmatprep.subr.mxu0 0.0
    %105 = vmatpush1.msra.mxu0 %v66
    %106 = vmatprep.subr.mxu0 0.0
    %107 = vmatpush1.msra.mxu0 %v67
    %108 = vmatprep.subr.mxu0 0.0
    %109 = vmatpush1.msra.mxu0 %v68
    %110 = vmatprep.subr.mxu0 0.0
    %111 = vmatpush1.msra.mxu0 %v69
    %112 = vmatprep.subr.mxu0 0.0
    %113 = vmatpush1.msra.mxu0 %v70
    %114 = vmatprep.subr.mxu0 0.0
    %115 = vmatpush1.msra.mxu0 %v71
    %116 = vmatprep.subr.mxu0 0.0
    %117 = vmatpush1.msra.mxu0 0.0
    %118 = vmatprep.subr.mxu0 0.0
    %119 = vmatpush1.msra.mxu0 0.0
    %120 = vmatprep.subr.mxu0 0.0
    %121 = vmatpush1.msra.mxu0 0.0
    %122 = vmatprep.subr.mxu0 0.0
    %123 = vmatpush1.msra.mxu0 0.0
    %124 = vmatprep.subr.mxu0 0.0
    %125 = vmatpush1.msra.mxu0 0.0
    %126 = vmatprep.subr.mxu0 0.0
    %127 = vmatpush1.msra.mxu0 0.0
    %128 = vmatprep.subr.mxu0 0.0
    %129 = vmatpush1.msra.mxu0 0.0
    %130 = vmatprep.subr.mxu0 0.0
    %131 = vmatpush1.msra.mxu0 0.0
    %132 = vmatprep.subr.mxu0 0.0
    %133 = vmatpush1.msra.mxu0 0.0
    %134 = vmatprep.subr.mxu0 0.0
    %135 = vmatpush1.msra.mxu0 0.0
    %136 = vmatprep.subr.mxu0 0.0
    %137 = vmatpush1.msra.mxu0 0.0
    %138 = vmatprep.subr.mxu0 0.0
    %139 = vmatpush1.msra.mxu0 0.0
    %140 = vmatprep.subr.mxu0 0.0
    %141 = vmatpush1.msra.mxu0 0.0
    %142 = vmatprep.subr.mxu0 0.0
    %143 = vmatpush1.msra.mxu0 0.0
    %144 = vmatprep.subr.mxu0 0.0
    %145 = vmatpush1.msra.mxu0 0.0
    %146 = vmatprep.subr.mxu0 0.0
    %147 = vmatpush1.msra.mxu0 0.0
    %148 = vmatprep.mubr.f32.mxu0 0.0
    %149 = vmatmul.mubr.f32.gmra.mrb[0].mxu0 %v77
    %v150 = vpop.f32.mrb[0].mxu0
    %v151 = vadd.f32 %v82, %v150
    %v152 = vpop.f32.mrb[0].mxu0
    %153 = vdwg.mxu0
    %v154 = vmax.f32 %v151, 0.0
    %v156 = vlaneseq
    %v157 = vshrl.u32 %v156, 7
    %v158 = vsub.s32 0, %v157
    %v159 = vrot.slane %v73, %v158
    %v161 = vmul.f32 %v154, %v159
    %vm162 = vcmask 257024
    %v163 = vsel %vm162, %v161, 0.0
    %164 = vadd.xlane.f32.xlu0 %v163
    %v165 = vpop.xlane.xlu0 %164
    %v166 = vstv %s74
    %v167 = vadd.f32 %v165, %v166
    %s168 = sld [smem:[#allocation3]]
    %s169 = sld [smem:[#allocation6]]
    %v170 = vstv %s168
    %v171 = vmul.f32 %v170, %v77
    %v172 = vstv %s169
    %v173 = vadd.f32 %v171, %v172
    %v174 = vmax.f32 %v173, 0.0
    %s175 = sld [smem:[#allocation3 + $0x1]]
    %s176 = sld [smem:[#allocation6 + $0x1]]
    %v177 = vstv %s175
    %v178 = vmul.f32 %v177, %v77
    %v179 = vstv %s176
    %v180 = vadd.f32 %v178, %v179
    %v181 = vmin.f32 %v180, 0.0
    %v182 = vadd.f32 %v174, %v181
    %s183 = sld [smem:[#allocation3 + $0x2]]
    %s184 = sld [smem:[#allocation6 + $0x2]]
    %v185 = vstv %s183
    %v186 = vmul.f32 %v185, %v77
    %v187 = vstv %s184
    %v188 = vadd.f32 %v186, %v187
    %v189 = vmax.f32 %v188, 0.0
    %v190 = vadd.f32 %v182, %v189
    %s191 = sld [smem:[#allocation3 + $0x3]]
    %s192 = sld [smem:[#allocation6 + $0x3]]
    %v193 = vstv %s191
    %v194 = vmul.f32 %v193, %v77
    %v195 = vstv %s192
    %v196 = vadd.f32 %v194, %v195
    %v197 = vmin.f32 %v196, 0.0
    %v198 = vadd.f32 %v190, %v197
    %s199 = sld [smem:[#allocation3 + $0x4]]
    %s200 = sld [smem:[#allocation6 + $0x4]]
    %v201 = vstv %s199
    %v202 = vmul.f32 %v201, %v77
    %v203 = vstv %s200
    %v204 = vadd.f32 %v202, %v203
    %v205 = vmax.f32 %v204, 0.0
    %v206 = vadd.f32 %v198, %v205
    %s207 = sld [smem:[#allocation3 + $0x5]]
    %s208 = sld [smem:[#allocation6 + $0x5]]
    %v209 = vstv %s207
    %v210 = vmul.f32 %v209, %v77
    %v211 = vstv %s208
    %v212 = vadd.f32 %v210, %v211
    %v213 = vmax.f32 %v212, 0.0
    %v214 = vadd.f32 %v206, %v213
    %s215 = sld [smem:[#allocation3 + $0x6]]
    %s216 = sld [smem:[#allocation6 + $0x6]]
    %v217 = vstv %s215
    %v218 = vmul.f32 %v217, %v77
    %v219 = vstv %s216
    %v220 = vadd.f32 %v218, %v219
    %v221 = vmax.f32 %v220, 0.0
    %v222 = vadd.f32 %v214, %v221
    %s223 = sld [smem:[#allocation3 + $0x7]]
    %s224 = sld [smem:[#allocation6 + $0x7]]
    %v225 = vstv %s223
    %v226 = vmul.f32 %v225, %v77
    %v227 = vstv %s224
    %v228 = vadd.f32 %v226, %v227
    %v229 = vmin.f32 %v228, 0.0
    %v230 = vadd.f32 %v222, %v229
    %s231 = sld [smem:[#allocation3 + $0x8]]
    %s232 = sld [smem:[#allocation6 + $0x8]]
    %v233 = vstv %s231
    %v234 = vmul.f32 %v233, %v77
    %v235 = vstv %s232
    %v236 = vadd.f32 %v234, %v235
    %v237 = vmin.f32 %v236, 0.0
    %v238 = vadd.f32 %v230, %v237
    %s239 = sld [smem:[#allocation3 + $0x9]]
    %s240 = sld [smem:[#allocation6 + $0x9]]
    %v241 = vstv %s239
    %v242 = vmul.f32 %v241, %v77
    %v243 = vstv %s240
    %v244 = vadd.f32 %v242, %v243
    %v245 = vmin.f32 %v244, 0.0
    %v246 = vadd.f32 %v238, %v245
    %s247 = sld [smem:[#allocation3 + $0xa]]
    %s248 = sld [smem:[#allocation6 + $0xa]]
    %v249 = vstv %s247
    %v250 = vmul.f32 %v249, %v77
    %v251 = vstv %s248
    %v252 = vadd.f32 %v250, %v251
    %v253 = vmax.f32 %v252, 0.0
    %v254 = vadd.f32 %v246, %v253
    %s255 = sld [smem:[#allocation3 + $0xb]]
    %s256 = sld [smem:[#allocation6 + $0xb]]
    %v257 = vstv %s255
    %v258 = vmul.f32 %v257, %v77
    %v259 = vstv %s256
    %v260 = vadd.f32 %v258, %v259
    %v261 = vmax.f32 %v260, 0.0
    %v262 = vadd.f32 %v254, %v261
    %s263 = sld [smem:[#allocation3 + $0xc]]
    %s264 = sld [smem:[#allocation6 + $0xc]]
    %v265 = vstv %s263
    %v266 = vmul.f32 %v265, %v77
    %v267 = vstv %s264
    %v268 = vadd.f32 %v266, %v267
    %v269 = vmin.f32 %v268, 0.0
    %v270 = vadd.f32 %v262, %v269
    %s271 = sld [smem:[#allocation3 + $0xd]]
    %s272 = sld [smem:[#allocation6 + $0xd]]
    %v273 = vstv %s271
    %v274 = vmul.f32 %v273, %v77
    %v275 = vstv %s272
    %v276 = vadd.f32 %v274, %v275
    %v277 = vmax.f32 %v276, 0.0
    %v278 = vadd.f32 %v270, %v277
    %s279 = sld [smem:[#allocation3 + $0xe]]
    %s280 = sld [smem:[#allocation6 + $0xe]]
    %v281 = vstv %s279
    %v282 = vmul.f32 %v281, %v77
    %v283 = vstv %s280
    %v284 = vadd.f32 %v282, %v283
    %v285 = vmax.f32 %v284, 0.0
    %v286 = vadd.f32 %v278, %v285
    %s287 = sld [smem:[#allocation3 + $0xf]]
    %s288 = sld [smem:[#allocation6 + $0xf]]
    %v289 = vstv %s287
    %v290 = vmul.f32 %v289, %v77
    %v291 = vstv %s288
    %v292 = vadd.f32 %v290, %v291
    %v293 = vmax.f32 %v292, 0.0
    %v294 = vadd.f32 %v286, %v293
    %s295 = sld [smem:[#allocation3 + $0x10]]
    %s296 = sld [smem:[#allocation6 + $0x10]]
    %v297 = vstv %s295
    %v298 = vmul.f32 %v297, %v77
    %v299 = vstv %s296
    %v300 = vadd.f32 %v298, %v299
    %v301 = vmin.f32 %v300, 0.0
    %v302 = vadd.f32 %v294, %v301
    %s303 = sld [smem:[#allocation3 + $0x11]]
    %s304 = sld [smem:[#allocation6 + $0x11]]
    %v305 = vstv %s303
    %v306 = vmul.f32 %v305, %v77
    %v307 = vstv %s304
    %v308 = vadd.f32 %v306, %v307
    %v309 = vmin.f32 %v308, 0.0
    %v310 = vadd.f32 %v302, %v309
    %s311 = sld [smem:[#allocation3 + $0x12]]
    %s312 = sld [smem:[#allocation6 + $0x12]]
    %v313 = vstv %s311
    %v314 = vmul.f32 %v313, %v77
    %v315 = vstv %s312
    %v316 = vadd.f32 %v314, %v315
    %v317 = vmin.f32 %v316, 0.0
    %v318 = vadd.f32 %v310, %v317
    %s319 = sld [smem:[#allocation3 + $0x13]]
    %s320 = sld [smem:[#allocation6 + $0x13]]
    %v321 = vstv %s319
    %v322 = vmul.f32 %v321, %v77
    %v323 = vstv %s320
    %v324 = vadd.f32 %v322, %v323
    %v325 = vmax.f32 %v324, 0.0
    %v326 = vadd.f32 %v318, %v325
    %s327 = sld [smem:[#allocation3 + $0x14]]
    %s328 = sld [smem:[#allocation6 + $0x14]]
    %v329 = vstv %s327
    %v330 = vmul.f32 %v329, %v77
    %v331 = vstv %s328
    %v332 = vadd.f32 %v330, %v331
    %v333 = vmax.f32 %v332, 0.0
    %v334 = vadd.f32 %v326, %v333
    %s335 = sld [smem:[#allocation3 + $0x15]]
    %s336 = sld [smem:[#allocation6 + $0x15]]
    %v337 = vstv %s335
    %v338 = vmul.f32 %v337, %v77
    %v339 = vstv %s336
    %v340 = vadd.f32 %v338, %v339
    %v341 = vmin.f32 %v340, 0.0
    %v342 = vadd.f32 %v334, %v341
    %s343 = sld [smem:[#allocation3 + $0x16]]
    %s344 = sld [smem:[#allocation6 + $0x16]]
    %v345 = vstv %s343
    %v346 = vmul.f32 %v345, %v77
    %v347 = vstv %s344
    %v348 = vadd.f32 %v346, %v347
    %v349 = vmax.f32 %v348, 0.0
    %v350 = vadd.f32 %v342, %v349
    %s351 = sld [smem:[#allocation3 + $0x17]]
    %s352 = sld [smem:[#allocation6 + $0x17]]
    %v353 = vstv %s351
    %v354 = vmul.f32 %v353, %v77
    %v355 = vstv %s352
    %v356 = vadd.f32 %v354, %v355
    %v357 = vmin.f32 %v356, 0.0
    %v358 = vadd.f32 %v350, %v357
    %s359 = sld [smem:[#allocation3 + $0x18]]
    %s360 = sld [smem:[#allocation6 + $0x18]]
    %v361 = vstv %s359
    %v362 = vmul.f32 %v361, %v77
    %v363 = vstv %s360
    %v364 = vadd.f32 %v362, %v363
    %v365 = vmax.f32 %v364, 0.0
    %v366 = vadd.f32 %v358, %v365
    %s367 = sld [smem:[#allocation3 + $0x19]]
    %s368 = sld [smem:[#allocation6 + $0x19]]
    %v369 = vstv %s367
    %v370 = vmul.f32 %v369, %v77
    %v371 = vstv %s368
    %v372 = vadd.f32 %v370, %v371
    %v373 = vmax.f32 %v372, 0.0
    %v374 = vadd.f32 %v366, %v373
    %s375 = sld [smem:[#allocation3 + $0x1a]]
    %s376 = sld [smem:[#allocation6 + $0x1a]]
    %v377 = vstv %s375
    %v378 = vmul.f32 %v377, %v77
    %v379 = vstv %s376
    %v380 = vadd.f32 %v378, %v379
    %v381 = vmax.f32 %v380, 0.0
    %v382 = vadd.f32 %v374, %v381
    %s383 = sld [smem:[#allocation3 + $0x1b]]
    %s384 = sld [smem:[#allocation6 + $0x1b]]
    %v385 = vstv %s383
    %v386 = vmul.f32 %v385, %v77
    %v387 = vstv %s384
    %v388 = vadd.f32 %v386, %v387
    %v389 = vmax.f32 %v388, 0.0
    %v390 = vadd.f32 %v382, %v389
    %s391 = sld [smem:[#allocation3 + $0x1c]]
    %s392 = sld [smem:[#allocation6 + $0x1c]]
    %v393 = vstv %s391
    %v394 = vmul.f32 %v393, %v77
    %v395 = vstv %s392
    %v396 = vadd.f32 %v394, %v395
    %v397 = vmin.f32 %v396, 0.0
    %v398 = vadd.f32 %v390, %v397
    %s399 = sld [smem:[#allocation3 + $0x1d]]
    %s400 = sld [smem:[#allocation6 + $0x1d]]
    %v401 = vstv %s399
    %v402 = vmul.f32 %v401, %v77
    %v403 = vstv %s400
    %v404 = vadd.f32 %v402, %v403
    %v405 = vmax.f32 %v404, 0.0
    %v406 = vadd.f32 %v398, %v405
    %s407 = sld [smem:[#allocation3 + $0x1e]]
    %s408 = sld [smem:[#allocation6 + $0x1e]]
    %v409 = vstv %s407
    %v410 = vmul.f32 %v409, %v77
    %v411 = vstv %s408
    %v412 = vadd.f32 %v410, %v411
    %v413 = vmax.f32 %v412, 0.0
    %v414 = vadd.f32 %v406, %v413
    %s415 = sld [smem:[#allocation3 + $0x1f]]
    %s416 = sld [smem:[#allocation6 + $0x1f]]
    %v417 = vstv %s415
    %v418 = vmul.f32 %v417, %v77
    %v419 = vstv %s416
    %v420 = vadd.f32 %v418, %v419
    %v421 = vmin.f32 %v420, 0.0
    %v422 = vadd.f32 %v414, %v421
    %v423 = vadd.f32 %v167, %v422
    %v424 = vsub.f32 0.0, %v423
    %v425 = vmul.f32 %v424, 1.442695
    %v426 = vpow.pop %v425
    %v427 = vadd.f32 %v426, 1.0
    %v428 = vrcp.pop %v427
    %v429 = vsub.f32 %v75, %v76
    %v430 = vmul.f32 %v429, %v428
    %v431 = vadd.f32 %v76, %v430
    %432 = vst [vmem:[#allocation8] sm:$0xf] %v431
    // Predicated region
    $region42: #{_lambda_.1} parent=1 // pred_check
      _
    $region43: #{_lambda_.1} parent=1 // pred_check_branch
      %434 = sbr.rel (0) target = $region45
    $region44: #{_lambda_.1} parent=1 // pred_region
      %s436 = ssub.s32 64, 64
      %437 = vsyncadd [#allocation4], %s436
      %s439 = sshll.u32 [#allocation8], 4
      %s440 = int_to_ptr.vmem [resolvable:$true] %s439
      %442 = dma.vmem_to_hbm [thread:$0]  %s440, 64, %s8, [#allocation4]
    $region45: #{_lambda_.1} parent=1 // pred_fallthru
      _
    // Predicated region
    $region46: #{_lambda_.1} parent=1 // pred_check
      _
    $region47: #{_lambda_.1} parent=1 // pred_check_branch
      %444 = sbr.rel (0) target = $region49
    $region48: #{_lambda_.1} parent=1 // pred_region
      %445 = dma.done [#allocation4], 64
    $region49: #{_lambda_.1} parent=1 // pred_fallthru
      _
    %446 = vsyncpa [#allocation4], 1
    %447 = vsyncpa [#allocation5], 1
    %448 = vsyncpa [#allocation7], 1

</llo_original>
